<compile_context>
chip_gen: v6e
topology: v6e:2x2x1
jax: 0.10.0
libtpu: 0.0.40
codegen_flags: <defaults>
</compile_context>

<pallas_src>
import jax
import jax.numpy as jnp
from jax import lax
from jax.experimental import pallas as pl
from jax.experimental.pallas import tpu as pltpu


def _round_up(x: int, m: int) -> int:
    return ((x + m - 1) // m) * m


def _two_layer_kernel(x_ref, w1_ref, b1_ref, w2_ref, b2_ref, out_ref):
    # x_ref:  (TILE_N, D_pad)   flattened input tile
    # w1_ref: (H_pad,  D_pad)   fc1 weight, torch (out, in) layout (zero-padded)
    # b1_ref: (1, H_pad)        fc1 bias
    # w2_ref: (C_pad,  H_pad)   fc2 weight, torch (out, in) layout (zero-padded)
    # b2_ref: (1, C_pad)        fc2 bias
    # out_ref:(TILE_N, C_pad)
    x = x_ref[...]

    # fc1: contract x's feature axis with w1's feature axis (== x @ w1.T), f32 accumulate.
    h = lax.dot_general(
        x, w1_ref[...], (((1,), (1,)), ((), ())),
        preferred_element_type=jnp.float32,
    )
    h = jax.nn.sigmoid(h + b1_ref[...])  # padded hidden cols become sigmoid(0)=0.5 ...

    # fc2: padded hidden cols of w2 are zero, so the 0.5s contribute exactly 0.
    y = lax.dot_general(
        h, w2_ref[...], (((1,), (1,)), ((), ())),
        preferred_element_type=jnp.float32,
    )
    out_ref[...] = jax.nn.sigmoid(y + b2_ref[...]).astype(out_ref.dtype)


def two_layer_net(x_nchw, w1, b1, w2, b2, *, tile_n=512):
    """Forward pass of TwoLayerNet.

    x_nchw: (N, C, H, W) float32
    w1: (hidden, input_dim)   -- torch Linear layout
    b1: (hidden,)
    w2: (num_classes, hidden) -- torch Linear layout
    b2: (num_classes,)
    returns: (N, num_classes) float32
    """
    n = x_nchw.shape[0]
    x_flat = x_nchw.reshape(n, -1)  # nn.Flatten (row-major, matches torch)
    d = x_flat.shape[1]
    hidden = w1.shape[0]
    num_classes = w2.shape[0]

    # Lane/sublane-aligned padded dims.
    d_pad = _round_up(d, 128)
    h_pad = _round_up(hidden, 128)
    c_pad = _round_up(num_classes, 128)

    # Batch tile: large (default 512 rows) for pipelining, clamped for small batches;
    # always a multiple of 8 (sublane).
    tile_n = min(tile_n, _round_up(n, 8))
    n_pad = _round_up(n, tile_n)

    # Zero-pad everything; padded weight entries are zero so math is unchanged.
    x_p = jnp.pad(x_flat, ((0, n_pad - n), (0, d_pad - d)))
    w1_p = jnp.pad(w1, ((0, h_pad - hidden), (0, d_pad - d)))
    b1_p = jnp.pad(b1, (0, h_pad - hidden)).reshape(1, h_pad)
    w2_p = jnp.pad(w2, ((0, c_pad - num_classes), (0, h_pad - hidden)))
    b2_p = jnp.pad(b2, (0, c_pad - num_classes)).reshape(1, c_pad)

    grid = (n_pad // tile_n,)

    flops = 2 * n_pad * (d_pad * h_pad + h_pad * c_pad)
    transcendentals = n_pad * (h_pad + c_pad)  # one exp per sigmoid element
    bytes_accessed = 4 * (x_p.size + w1_p.size + b1_p.size
                          + w2_p.size + b2_p.size + n_pad * c_pad)

    out = pl.pallas_call(
        _two_layer_kernel,
        out_shape=jax.ShapeDtypeStruct((n_pad, c_pad), jnp.float32),
        grid=grid,
        in_specs=[
            pl.BlockSpec((tile_n, d_pad), lambda i: (i, 0)),   # x: tiled over batch
            pl.BlockSpec((h_pad, d_pad), lambda i: (0, 0)),    # w1: VMEM-resident
            pl.BlockSpec((1, h_pad), lambda i: (0, 0)),        # b1
            pl.BlockSpec((c_pad, h_pad), lambda i: (0, 0)),    # w2
            pl.BlockSpec((1, c_pad), lambda i: (0, 0)),        # b2
        ],
        out_specs=pl.BlockSpec((tile_n, c_pad), lambda i: (i, 0)),
        compiler_params=pltpu.CompilerParams(
            dimension_semantics=("parallel",),        # megacore sharding on v7x
            vmem_limit_bytes=32 * 1024 * 1024,        # explicit budget (safe on v5e/v6e/v7x)
        ),
        cost_estimate=pl.CostEstimate(
            flops=flops,
            transcendentals=transcendentals,
            bytes_accessed=bytes_accessed,
        ),
    )(x_p, w1_p, b1_p, w2_p, b2_p)

    # Strip batch / class padding.
    return out[:n, :num_classes]


if __name__ == "__main__":
    # Small, deterministic setup consistent with the module's forward:
    # x is an NCHW image batch flattened to input_dim = C*H*W.
    N, C, H, W = 2, 4, 16, 16
    input_dim = C * H * W          # 1024
    hidden_size = 32
    num_classes = 10

    key = jax.random.PRNGKey(0)
    kx, kw1, kb1, kw2, kb2 = jax.random.split(key, 5)

    x = jax.random.normal(kx, (N, C, H, W), dtype=jnp.float32)
    # Deterministic parameter init (torch-Linear shaped: (out_features, in_features)).
    w1 = jax.random.normal(kw1, (hidden_size, input_dim), dtype=jnp.float32) * 0.02
    b1 = jax.random.normal(kb1, (hidden_size,), dtype=jnp.float32) * 0.02
    w2 = jax.random.normal(kw2, (num_classes, hidden_size), dtype=jnp.float32) * 0.02
    b2 = jax.random.normal(kb2, (num_classes,), dtype=jnp.float32) * 0.02

    out = two_layer_net(x, w1, b1, w2, b2)
    jax.block_until_ready(out)

    # Pure-JAX reference check of the same forward semantics.
    ref = jax.nn.sigmoid(
        jax.nn.sigmoid(x.reshape(N, -1) @ w1.T + b1) @ w2.T + b2
    )
    assert out.shape == (N, num_classes)
    assert jnp.allclose(out, ref, atol=1e-5, rtol=1e-5)

    print("KERNEL_OK")
</pallas_src>

<mosaic_0001>
module attributes {stable_mosaic.version = 11 : i64} {
  func.func @_two_layer_kernel(%arg0: i32, %arg1: memref<8x1024xf32, #tpu.memory_space<vmem>>, %arg2: memref<128x1024xf32, #tpu.memory_space<vmem>>, %arg3: memref<1x128xf32, #tpu.memory_space<vmem>>, %arg4: memref<128x128xf32, #tpu.memory_space<vmem>>, %arg5: memref<1x128xf32, #tpu.memory_space<vmem>>, %arg6: memref<8x128xf32, #tpu.memory_space<vmem>>) attributes {dimension_semantics = [#tpu.dimension_semantics<parallel>], iteration_bounds = array<i64: 1>, scalar_prefetch = 0 : i64, scratch_operands = 0 : i64, tpu.core_type = #tpu.core_type<tc>, window_params = [{transform_indices = @transform_0, window_bounds = array<i64: 8, 1024>}, {pipeline_mode = #tpu.pipeline_mode<synchronous>, transform_indices = @transform_1, window_bounds = array<i64: 128, 1024>}, {pipeline_mode = #tpu.pipeline_mode<synchronous>, transform_indices = @transform_2, window_bounds = array<i64: 1, 128>}, {pipeline_mode = #tpu.pipeline_mode<synchronous>, transform_indices = @transform_3, window_bounds = array<i64: 128, 128>}, {pipeline_mode = #tpu.pipeline_mode<synchronous>, transform_indices = @transform_4, window_bounds = array<i64: 1, 128>}, {transform_indices = @transform_5, window_bounds = array<i64: 8, 128>}]} {
    %c0 = arith.constant 0 : index
    %c0_0 = arith.constant 0 : index
    %0 = vector.load %arg1[%c0, %c0_0] : memref<8x1024xf32, #tpu.memory_space<vmem>>, vector<8x1024xf32>
    %c0_1 = arith.constant 0 : index
    %c0_2 = arith.constant 0 : index
    %1 = vector.load %arg2[%c0_1, %c0_2] : memref<128x1024xf32, #tpu.memory_space<vmem>>, vector<128x1024xf32>
    %cst = arith.constant dense<0.000000e+00> : vector<8x128xf32>
    %2 = tpu.matmul %0, %1, %cst {dimension_numbers = #tpu.dot_dimension_numbers<[1], [1], [0], [0], [0, 0, 1, 0], [], []>} : vector<8x1024xf32>, vector<128x1024xf32>, vector<8x128xf32> -> vector<8x128xf32>
    %c0_3 = arith.constant 0 : index
    %c0_4 = arith.constant 0 : index
    %3 = vector.load %arg3[%c0_3, %c0_4] : memref<1x128xf32, #tpu.memory_space<vmem>>, vector<1x128xf32>
    %4 = vector.broadcast %3 : vector<1x128xf32> to vector<8x128xf32>
    %5 = arith.addf %2, %4 : vector<8x128xf32>
    %6 = arith.negf %5 : vector<8x128xf32>
    %7 = math.exp %6 : vector<8x128xf32>
    %cst_5 = arith.constant 1.000000e+00 : f32
    %8 = vector.broadcast %cst_5 : f32 to vector<8x128xf32>
    %9 = arith.addf %8, %7 : vector<8x128xf32>
    %10 = arith.divf %8, %9 : vector<8x128xf32>
    %c0_6 = arith.constant 0 : index
    %c0_7 = arith.constant 0 : index
    %11 = vector.load %arg4[%c0_6, %c0_7] : memref<128x128xf32, #tpu.memory_space<vmem>>, vector<128x128xf32>
    %cst_8 = arith.constant dense<0.000000e+00> : vector<8x128xf32>
    %12 = tpu.matmul %10, %11, %cst_8 {dimension_numbers = #tpu.dot_dimension_numbers<[1], [1], [0], [0], [0, 0, 1, 0], [], []>} : vector<8x128xf32>, vector<128x128xf32>, vector<8x128xf32> -> vector<8x128xf32>
    %c0_9 = arith.constant 0 : index
    %c0_10 = arith.constant 0 : index
    %13 = vector.load %arg5[%c0_9, %c0_10] : memref<1x128xf32, #tpu.memory_space<vmem>>, vector<1x128xf32>
    %14 = vector.broadcast %13 : vector<1x128xf32> to vector<8x128xf32>
    %15 = arith.addf %12, %14 : vector<8x128xf32>
    %16 = arith.negf %15 : vector<8x128xf32>
    %17 = math.exp %16 : vector<8x128xf32>
    %cst_11 = arith.constant 1.000000e+00 : f32
    %18 = vector.broadcast %cst_11 : f32 to vector<8x128xf32>
    %19 = arith.addf %18, %17 : vector<8x128xf32>
    %20 = arith.divf %18, %19 : vector<8x128xf32>
    %c0_12 = arith.constant 0 : index
    %c0_13 = arith.constant 0 : index
    %21 = vector.load %arg6[%c0_12, %c0_13] : memref<8x128xf32, #tpu.memory_space<vmem>>, vector<8x128xf32>
    tpu.vector_store %arg6[%c0_12, %c0_13], %20 {strides = array<i32>} : memref<8x128xf32, #tpu.memory_space<vmem>>, vector<8x128xf32>,
    return
  }
  func.func @transform_0(%arg0: i32) -> (i32, i32) {
    %c0_i32 = arith.constant 0 : i32
    %c0_i32_0 = arith.constant 0 : i32
    return %arg0, %c0_i32 : i32, i32
  }
  func.func @transform_1(%arg0: i32) -> (i32, i32) {
    %c0_i32 = arith.constant 0 : i32
    %c0_i32_0 = arith.constant 0 : i32
    %c0_i32_1 = arith.constant 0 : i32
    return %c0_i32, %c0_i32_0 : i32, i32
  }
  func.func @transform_2(%arg0: i32) -> (i32, i32) {
    %c0_i32 = arith.constant 0 : i32
    %c0_i32_0 = arith.constant 0 : i32
    %c0_i32_1 = arith.constant 0 : i32
    return %c0_i32, %c0_i32_0 : i32, i32
  }
  func.func @transform_3(%arg0: i32) -> (i32, i32) {
    %c0_i32 = arith.constant 0 : i32
    %c0_i32_0 = arith.constant 0 : i32
    %c0_i32_1 = arith.constant 0 : i32
    return %c0_i32, %c0_i32_0 : i32, i32
  }
  func.func @transform_4(%arg0: i32) -> (i32, i32) {
    %c0_i32 = arith.constant 0 : i32
    %c0_i32_0 = arith.constant 0 : i32
    %c0_i32_1 = arith.constant 0 : i32
    return %c0_i32, %c0_i32_0 : i32, i32
  }
  func.func @transform_5(%arg0: i32) -> (i32, i32) {
    %c0_i32 = arith.constant 0 : i32
    %c0_i32_0 = arith.constant 0 : i32
    return %arg0, %c0_i32 : i32, i32
  }
}

</mosaic_0001>

<llo_original>
// kernel: tpu_custom_call.1
$region0: #{tpu_custom_call.1}
  #allocation0 [shape = 'u32[]', space=smem, size = 0x4, offset = 0x4, fixed_abs, tag = 'smem constant byte address 0x4 - core index']
  #allocation1 [shape = 'u32[144,128]{1,0:T(1,128)}', space=vmem, size = 0x12000, scoped, tag = 'internal scratch']
  %s0 = inlined_call_operand.hbm [shape: f32[8,1024], index: 0, kind: input, shape index: {}]
  %s1 = inlined_call_operand.hbm [shape: f32[128,1024], index: 1, kind: input, shape index: {}]
  %s2 = inlined_call_operand.vmem [shape: f32[1,128], index: 2, kind: input, shape index: {}]
  %s3 = inlined_call_operand.hbm [shape: f32[128,128], index: 3, kind: input, shape index: {}]
  %s4 = inlined_call_operand.vmem [shape: f32[1,128], index: 4, kind: input, shape index: {}]
  %s5 = inlined_call_operand.hbm [shape: f32[8,128], index: 5, kind: output, shape index: {}]
  %s6 = sld [smem:[#allocation0]]
  $region42: #{tpu_custom_call.1} parent=0
    _
  %s8 = ssub.s32 1, %s6
  %s9 = scalar_select 0, %s8, %s6
  $region1: #{tpu_custom_call.1} parent=0
    #allocation2 [shape = 'u8[32768]{0}', space=vmem, size = 0x8000, scoped, tag = 'input window, operand 0, single buffered']
    #allocation3 [shape = 's32[1]{0}', space=sflag, size = 0x4, scoped, tag = 'scoped memory for tpu_custom_call.1']
    #allocation4 [shape = 's32[1]{0}', space=sflag, size = 0x4, scoped, tag = 'scoped memory for tpu_custom_call.1']
    #allocation5 [shape = 'u8[524288]{0}', space=vmem, size = 0x80000, scoped, tag = 'input window, operand 1, single buffered']
    #allocation6 [shape = 's32[1]{0}', space=sflag, size = 0x4, scoped, tag = 'scoped memory for tpu_custom_call.1']
    #allocation7 [shape = 'u8[65536]{0}', space=vmem, size = 0x10000, scoped, tag = 'input window, operand 3, single buffered']
    #allocation8 [shape = 'u8[4096]{0}', space=vmem, size = 0x1000, scoped, tag = 'output window, operand 0, single buffered']
    %10 = vsyncpa [#allocation3], 0
    %11 = vsyncpa [#allocation6], 0
    %12 = vsyncpa [#allocation4], 0
    // Predicated region
    $region2: #{tpu_custom_call.1} parent=1 // pred_check
      _
    $region3: #{tpu_custom_call.1} parent=1 // pred_check_branch
      %14 = sbr.rel (0) target = $region5
    $region4: #{tpu_custom_call.1} parent=1 // pred_region
      %s16 = ssub.s32 1024, 1024
      %17 = vsyncadd [#allocation3], %s16
      %s19 = sshll.u32 [#allocation2], 4
      %s20 = int_to_ptr.vmem [resolvable:$true] %s19
      %22 = dma.hbm_to_vmem [thread:$0]  %s0, 1024, %s20, [#allocation3]
    $region5: #{tpu_custom_call.1} parent=1 // pred_fallthru
      _
    // Predicated region
    $region6: #{tpu_custom_call.1} parent=1 // pred_check
      _
    $region7: #{tpu_custom_call.1} parent=1 // pred_check_branch
      %24 = sbr.rel (0) target = $region9
    $region8: #{tpu_custom_call.1} parent=1 // pred_region
      %s26 = ssub.s32 16384, 16384
      %27 = vsyncadd [#allocation6], %s26
      %s28 = sshll.u32 [#allocation5], 4
      %s29 = int_to_ptr.vmem [resolvable:$true] %s28
      %34 = dma.hbm_to_vmem [thread:$0]  %s1, 16384, %s29, [#allocation6], 1024, 1024, 64
    $region9: #{tpu_custom_call.1} parent=1 // pred_fallthru
      _
    // Predicated region
    $region10: #{tpu_custom_call.1} parent=1 // pred_check
      _
    $region11: #{tpu_custom_call.1} parent=1 // pred_check_branch
      %36 = sbr.rel (0) target = $region13
    $region12: #{tpu_custom_call.1} parent=1 // pred_region
      _
    $region13: #{tpu_custom_call.1} parent=1 // pred_fallthru
      _
    // Predicated region
    $region14: #{tpu_custom_call.1} parent=1 // pred_check
      _
    $region15: #{tpu_custom_call.1} parent=1 // pred_check_branch
      %38 = sbr.rel (0) target = $region17
    $region16: #{tpu_custom_call.1} parent=1 // pred_region
      %s40 = ssub.s32 2048, 2048
      %41 = vsyncadd [#allocation6], %s40
      %s42 = sshll.u32 [#allocation7], 4
      %s43 = int_to_ptr.vmem [resolvable:$true] %s42
      %48 = dma.hbm_to_vmem [thread:$0]  %s3, 2048, %s43, [#allocation6], 128, 128, 8
    $region17: #{tpu_custom_call.1} parent=1 // pred_fallthru
      _
    // Predicated region
    $region18: #{tpu_custom_call.1} parent=1 // pred_check
      _
    $region19: #{tpu_custom_call.1} parent=1 // pred_check_branch
      %50 = sbr.rel (0) target = $region21
    $region20: #{tpu_custom_call.1} parent=1 // pred_region
      _
    $region21: #{tpu_custom_call.1} parent=1 // pred_fallthru
      _
    // Predicated region
    $region22: #{tpu_custom_call.1} parent=1 // pred_check
      _
    $region23: #{tpu_custom_call.1} parent=1 // pred_check_branch
      %52 = sbr.rel (0) target = $region25
    $region24: #{tpu_custom_call.1} parent=1 // pred_region
      %53 = dma.done [#allocation3], 1024
    $region25: #{tpu_custom_call.1} parent=1 // pred_fallthru
      _
    // Predicated region
    $region26: #{tpu_custom_call.1} parent=1 // pred_check
      _
    $region27: #{tpu_custom_call.1} parent=1 // pred_check_branch
      %55 = sbr.rel (0) target = $region29
    $region28: #{tpu_custom_call.1} parent=1 // pred_region
      %56 = dma.done [#allocation6], 16384
    $region29: #{tpu_custom_call.1} parent=1 // pred_fallthru
      _
    // Predicated region
    $region30: #{tpu_custom_call.1} parent=1 // pred_check
      _
    $region31: #{tpu_custom_call.1} parent=1 // pred_check_branch
      %58 = sbr.rel (0) target = $region33
    $region32: #{tpu_custom_call.1} parent=1 // pred_region
      %59 = dma.done [#allocation6], 2048
    $region33: #{tpu_custom_call.1} parent=1 // pred_fallthru
      _
    %v60 = vld [vmem:[#allocation2] sm:$0xff]
    %v61 = vld [vmem:[#allocation2 + $0x8] sm:$0xff]
    %v62 = vld [vmem:[#allocation2 + $0x10] sm:$0xff]
    %v63 = vld [vmem:[#allocation2 + $0x18] sm:$0xff]
    %v64 = vld [vmem:[#allocation2 + $0x20] sm:$0xff]
    %v65 = vld [vmem:[#allocation2 + $0x28] sm:$0xff]
    %v66 = vld [vmem:[#allocation2 + $0x30] sm:$0xff]
    %v67 = vld [vmem:[#allocation2 + $0x38] sm:$0xff]
    %v68 = vld [vmem:[#allocation5] sm:$0xff]
    %v69 = vld [vmem:[#allocation5 + $0x8] sm:$0xff]
    %v70 = vld [vmem:[#allocation5 + $0x10] sm:$0xff]
    %v71 = vld [vmem:[#allocation5 + $0x18] sm:$0xff]
    %v72 = vld [vmem:[#allocation5 + $0x20] sm:$0xff]
    %v73 = vld [vmem:[#allocation5 + $0x28] sm:$0xff]
    %v74 = vld [vmem:[#allocation5 + $0x30] sm:$0xff]
    %v75 = vld [vmem:[#allocation5 + $0x38] sm:$0xff]
    %v76 = vld [vmem:[#allocation5 + $0x40] sm:$0xff]
    %v77 = vld [vmem:[#allocation5 + $0x48] sm:$0xff]
    %v78 = vld [vmem:[#allocation5 + $0x50] sm:$0xff]
    %v79 = vld [vmem:[#allocation5 + $0x58] sm:$0xff]
    %v80 = vld [vmem:[#allocation5 + $0x60] sm:$0xff]
    %v81 = vld [vmem:[#allocation5 + $0x68] sm:$0xff]
    %v82 = vld [vmem:[#allocation5 + $0x70] sm:$0xff]
    %v83 = vld [vmem:[#allocation5 + $0x78] sm:$0xff]
    %v84 = vld [vmem:[#allocation5 + $0x80] sm:$0xff]
    %v85 = vld [vmem:[#allocation5 + $0x88] sm:$0xff]
    %v86 = vld [vmem:[#allocation5 + $0x90] sm:$0xff]
    %v87 = vld [vmem:[#allocation5 + $0x98] sm:$0xff]
    %v88 = vld [vmem:[#allocation5 + $0xa0] sm:$0xff]
    %v89 = vld [vmem:[#allocation5 + $0xa8] sm:$0xff]
    %v90 = vld [vmem:[#allocation5 + $0xb0] sm:$0xff]
    %v91 = vld [vmem:[#allocation5 + $0xb8] sm:$0xff]
    %v92 = vld [vmem:[#allocation5 + $0xc0] sm:$0xff]
    %v93 = vld [vmem:[#allocation5 + $0xc8] sm:$0xff]
    %v94 = vld [vmem:[#allocation5 + $0xd0] sm:$0xff]
    %v95 = vld [vmem:[#allocation5 + $0xd8] sm:$0xff]
    %v96 = vld [vmem:[#allocation5 + $0xe0] sm:$0xff]
    %v97 = vld [vmem:[#allocation5 + $0xe8] sm:$0xff]
    %v98 = vld [vmem:[#allocation5 + $0xf0] sm:$0xff]
    %v99 = vld [vmem:[#allocation5 + $0xf8] sm:$0xff]
    %v100 = vld [vmem:[#allocation5 + $0x100] sm:$0xff]
    %v101 = vld [vmem:[#allocation5 + $0x108] sm:$0xff]
    %v102 = vld [vmem:[#allocation5 + $0x110] sm:$0xff]
    %v103 = vld [vmem:[#allocation5 + $0x118] sm:$0xff]
    %v104 = vld [vmem:[#allocation5 + $0x120] sm:$0xff]
    %v105 = vld [vmem:[#allocation5 + $0x128] sm:$0xff]
    %v106 = vld [vmem:[#allocation5 + $0x130] sm:$0xff]
    %v107 = vld [vmem:[#allocation5 + $0x138] sm:$0xff]
    %v108 = vld [vmem:[#allocation5 + $0x140] sm:$0xff]
    %v109 = vld [vmem:[#allocation5 + $0x148] sm:$0xff]
    %v110 = vld [vmem:[#allocation5 + $0x150] sm:$0xff]
    %v111 = vld [vmem:[#allocation5 + $0x158] sm:$0xff]
    %v112 = vld [vmem:[#allocation5 + $0x160] sm:$0xff]
    %v113 = vld [vmem:[#allocation5 + $0x168] sm:$0xff]
    %v114 = vld [vmem:[#allocation5 + $0x170] sm:$0xff]
    %v115 = vld [vmem:[#allocation5 + $0x178] sm:$0xff]
    %v116 = vld [vmem:[#allocation5 + $0x180] sm:$0xff]
    %v117 = vld [vmem:[#allocation5 + $0x188] sm:$0xff]
    %v118 = vld [vmem:[#allocation5 + $0x190] sm:$0xff]
    %v119 = vld [vmem:[#allocation5 + $0x198] sm:$0xff]
    %v120 = vld [vmem:[#allocation5 + $0x1a0] sm:$0xff]
    %v121 = vld [vmem:[#allocation5 + $0x1a8] sm:$0xff]
    %v122 = vld [vmem:[#allocation5 + $0x1b0] sm:$0xff]
    %v123 = vld [vmem:[#allocation5 + $0x1b8] sm:$0xff]
    %v124 = vld [vmem:[#allocation5 + $0x1c0] sm:$0xff]
    %v125 = vld [vmem:[#allocation5 + $0x1c8] sm:$0xff]
    %v126 = vld [vmem:[#allocation5 + $0x1d0] sm:$0xff]
    %v127 = vld [vmem:[#allocation5 + $0x1d8] sm:$0xff]
    %v128 = vld [vmem:[#allocation5 + $0x1e0] sm:$0xff]
    %v129 = vld [vmem:[#allocation5 + $0x1e8] sm:$0xff]
    %v130 = vld [vmem:[#allocation5 + $0x1f0] sm:$0xff]
    %v131 = vld [vmem:[#allocation5 + $0x1f8] sm:$0xff]
    %v132 = vld [vmem:[#allocation5 + $0x200] sm:$0xff]
    %v133 = vld [vmem:[#allocation5 + $0x208] sm:$0xff]
    %v134 = vld [vmem:[#allocation5 + $0x210] sm:$0xff]
    %v135 = vld [vmem:[#allocation5 + $0x218] sm:$0xff]
    %v136 = vld [vmem:[#allocation5 + $0x220] sm:$0xff]
    %v137 = vld [vmem:[#allocation5 + $0x228] sm:$0xff]
    %v138 = vld [vmem:[#allocation5 + $0x230] sm:$0xff]
    %v139 = vld [vmem:[#allocation5 + $0x238] sm:$0xff]
    %v140 = vld [vmem:[#allocation5 + $0x240] sm:$0xff]
    %v141 = vld [vmem:[#allocation5 + $0x248] sm:$0xff]
    %v142 = vld [vmem:[#allocation5 + $0x250] sm:$0xff]
    %v143 = vld [vmem:[#allocation5 + $0x258] sm:$0xff]
    %v144 = vld [vmem:[#allocation5 + $0x260] sm:$0xff]
    %v145 = vld [vmem:[#allocation5 + $0x268] sm:$0xff]
    %v146 = vld [vmem:[#allocation5 + $0x270] sm:$0xff]
    %v147 = vld [vmem:[#allocation5 + $0x278] sm:$0xff]
    %v148 = vld [vmem:[#allocation5 + $0x280] sm:$0xff]
    %v149 = vld [vmem:[#allocation5 + $0x288] sm:$0xff]
    %v150 = vld [vmem:[#allocation5 + $0x290] sm:$0xff]
    %v151 = vld [vmem:[#allocation5 + $0x298] sm:$0xff]
    %v152 = vld [vmem:[#allocation5 + $0x2a0] sm:$0xff]
    %v153 = vld [vmem:[#allocation5 + $0x2a8] sm:$0xff]
    %v154 = vld [vmem:[#allocation5 + $0x2b0] sm:$0xff]
    %v155 = vld [vmem:[#allocation5 + $0x2b8] sm:$0xff]
    %v156 = vld [vmem:[#allocation5 + $0x2c0] sm:$0xff]
    %v157 = vld [vmem:[#allocation5 + $0x2c8] sm:$0xff]
    %v158 = vld [vmem:[#allocation5 + $0x2d0] sm:$0xff]
    %v159 = vld [vmem:[#allocation5 + $0x2d8] sm:$0xff]
    %v160 = vld [vmem:[#allocation5 + $0x2e0] sm:$0xff]
    %v161 = vld [vmem:[#allocation5 + $0x2e8] sm:$0xff]
    %v162 = vld [vmem:[#allocation5 + $0x2f0] sm:$0xff]
    %v163 = vld [vmem:[#allocation5 + $0x2f8] sm:$0xff]
    %v164 = vld [vmem:[#allocation5 + $0x300] sm:$0xff]
    %v165 = vld [vmem:[#allocation5 + $0x308] sm:$0xff]
    %v166 = vld [vmem:[#allocation5 + $0x310] sm:$0xff]
    %v167 = vld [vmem:[#allocation5 + $0x318] sm:$0xff]
    %v168 = vld [vmem:[#allocation5 + $0x320] sm:$0xff]
    %v169 = vld [vmem:[#allocation5 + $0x328] sm:$0xff]
    %v170 = vld [vmem:[#allocation5 + $0x330] sm:$0xff]
    %v171 = vld [vmem:[#allocation5 + $0x338] sm:$0xff]
    %v172 = vld [vmem:[#allocation5 + $0x340] sm:$0xff]
    %v173 = vld [vmem:[#allocation5 + $0x348] sm:$0xff]
    %v174 = vld [vmem:[#allocation5 + $0x350] sm:$0xff]
    %v175 = vld [vmem:[#allocation5 + $0x358] sm:$0xff]
    %v176 = vld [vmem:[#allocation5 + $0x360] sm:$0xff]
    %v177 = vld [vmem:[#allocation5 + $0x368] sm:$0xff]
    %v178 = vld [vmem:[#allocation5 + $0x370] sm:$0xff]
    %v179 = vld [vmem:[#allocation5 + $0x378] sm:$0xff]
    %v180 = vld [vmem:[#allocation5 + $0x380] sm:$0xff]
    %v181 = vld [vmem:[#allocation5 + $0x388] sm:$0xff]
    %v182 = vld [vmem:[#allocation5 + $0x390] sm:$0xff]
    %v183 = vld [vmem:[#allocation5 + $0x398] sm:$0xff]
    %v184 = vld [vmem:[#allocation5 + $0x3a0] sm:$0xff]
    %v185 = vld [vmem:[#allocation5 + $0x3a8] sm:$0xff]
    %v186 = vld [vmem:[#allocation5 + $0x3b0] sm:$0xff]
    %v187 = vld [vmem:[#allocation5 + $0x3b8] sm:$0xff]
    %v188 = vld [vmem:[#allocation5 + $0x3c0] sm:$0xff]
    %v189 = vld [vmem:[#allocation5 + $0x3c8] sm:$0xff]
    %v190 = vld [vmem:[#allocation5 + $0x3d0] sm:$0xff]
    %v191 = vld [vmem:[#allocation5 + $0x3d8] sm:$0xff]
    %v192 = vld [vmem:[#allocation5 + $0x3e0] sm:$0xff]
    %v193 = vld [vmem:[#allocation5 + $0x3e8] sm:$0xff]
    %v194 = vld [vmem:[#allocation5 + $0x3f0] sm:$0xff]
    %v195 = vld [vmem:[#allocation5 + $0x3f8] sm:$0xff]
    %v196 = vld [vmem:[%s2] sm:$0x1]
    %v198 = vlaneseq
    %v199 = vshrl.u32 %v198, 7
    %v200 = vsub.s32 0, %v199
    %v201 = vrot.slane %v196, %v200
    %203 = vmatprep.subr.mxu0 %v189
    %204 = vmatpush1.xpose.msra.mxu0 %v188
    %205 = vmatprep.subr.mxu0 %v181
    %206 = vmatpush1.xpose.msra.mxu0 %v180
    %207 = vmatprep.subr.mxu0 %v173
    %208 = vmatpush1.xpose.msra.mxu0 %v172
    %209 = vmatprep.subr.mxu0 %v165
    %210 = vmatpush1.xpose.msra.mxu0 %v164
    %211 = vmatprep.subr.mxu0 %v157
    %212 = vmatpush1.xpose.msra.mxu0 %v156
    %213 = vmatprep.subr.mxu0 %v149
    %214 = vmatpush1.xpose.msra.mxu0 %v148
    %215 = vmatprep.subr.mxu0 %v141
    %216 = vmatpush1.xpose.msra.mxu0 %v140
    %217 = vmatprep.subr.mxu0 %v133
    %218 = vmatpush1.xpose.msra.mxu0 %v132
    %219 = vmatprep.subr.mxu0 %v125
    %220 = vmatpush1.xpose.msra.mxu0 %v124
    %221 = vmatprep.subr.mxu0 %v117
    %222 = vmatpush1.xpose.msra.mxu0 %v116
    %223 = vmatprep.subr.mxu0 %v109
    %224 = vmatpush1.xpose.msra.mxu0 %v108
    %225 = vmatprep.subr.mxu0 %v101
    %226 = vmatpush1.xpose.msra.mxu0 %v100
    %227 = vmatprep.subr.mxu0 %v93
    %228 = vmatpush1.xpose.msra.mxu0 %v92
    %229 = vmatprep.subr.mxu0 %v85
    %230 = vmatpush1.xpose.msra.mxu0 %v84
    %231 = vmatprep.subr.mxu0 %v77
    %232 = vmatpush1.xpose.msra.mxu0 %v76
    %233 = vmatprep.subr.mxu0 %v69
    %234 = vmatpush1.xpose.msra.mxu0 %v68
    %235 = vmatprep.subr.mxu0 0.0
    %236 = vmatpush2.xpose.msra.mxu0 0.0
    %237 = vmatprep.subr.mxu0 0.0
    %238 = vmatpush2.xpose.msra.mxu0 0.0
    %239 = vmatprep.subr.mxu0 0.0
    %240 = vmatpush2.xpose.msra.mxu0 0.0
    %241 = vmatprep.subr.mxu0 0.0
    %242 = vmatpush2.xpose.msra.mxu0 0.0
    %243 = vmatprep.subr.mxu0 0.0
    %244 = vmatpush2.xpose.msra.mxu0 0.0
    %245 = vmatprep.subr.mxu0 0.0
    %246 = vmatpush2.xpose.msra.mxu0 0.0
    %247 = vmatprep.subr.mxu0 0.0
    %248 = vmatpush2.xpose.msra.mxu0 0.0
    %249 = vmatprep.subr.mxu0 0.0
    %250 = vmatpush2.xpose.msra.mxu0 0.0
    %251 = vmatprep.subr.mxu0 0.0
    %252 = vmatpush2.xpose.msra.mxu0 0.0
    %253 = vmatprep.subr.mxu0 0.0
    %254 = vmatpush2.xpose.msra.mxu0 0.0
    %255 = vmatprep.subr.mxu0 0.0
    %256 = vmatpush2.xpose.msra.mxu0 0.0
    %257 = vmatprep.subr.mxu0 0.0
    %258 = vmatpush2.xpose.msra.mxu0 0.0
    %259 = vmatprep.subr.mxu0 0.0
    %260 = vmatpush2.xpose.msra.mxu0 0.0
    %261 = vmatprep.subr.mxu0 0.0
    %262 = vmatpush2.xpose.msra.mxu0 0.0
    %263 = vmatprep.subr.mxu0 0.0
    %264 = vmatpush2.xpose.msra.mxu0 0.0
    %265 = vmatprep.subr.mxu0 0.0
    %266 = vmatpush2.xpose.msra.mxu0 0.0
    %267 = vmatprep.mubr.f32.mxu0 %v61
    %268 = vmatmul.mubr.f32.gmra.mxu0 %v60
    %v269 = vpop.f32.mrf.mxu0
    %v270 = vadd.f32 %v201, %v269
    %v271 = vpop.f32.mrf.mxu0
    %272 = vdwg.mxu0
    %273 = vmatprep.subr.mxu0 %v191
    %274 = vmatpush1.xpose.msra.mxu0 %v190
    %275 = vmatprep.subr.mxu0 %v183
    %276 = vmatpush1.xpose.msra.mxu0 %v182
    %277 = vmatprep.subr.mxu0 %v175
    %278 = vmatpush1.xpose.msra.mxu0 %v174
    %279 = vmatprep.subr.mxu0 %v167
    %280 = vmatpush1.xpose.msra.mxu0 %v166
    %281 = vmatprep.subr.mxu0 %v159
    %282 = vmatpush1.xpose.msra.mxu0 %v158
    %283 = vmatprep.subr.mxu0 %v151
    %284 = vmatpush1.xpose.msra.mxu0 %v150
    %285 = vmatprep.subr.mxu0 %v143
    %286 = vmatpush1.xpose.msra.mxu0 %v142
    %287 = vmatprep.subr.mxu0 %v135
    %288 = vmatpush1.xpose.msra.mxu0 %v134
    %289 = vmatprep.subr.mxu0 %v127
    %290 = vmatpush1.xpose.msra.mxu0 %v126
    %291 = vmatprep.subr.mxu0 %v119
    %292 = vmatpush1.xpose.msra.mxu0 %v118
    %293 = vmatprep.subr.mxu0 %v111
    %294 = vmatpush1.xpose.msra.mxu0 %v110
    %295 = vmatprep.subr.mxu0 %v103
    %296 = vmatpush1.xpose.msra.mxu0 %v102
    %297 = vmatprep.subr.mxu0 %v95
    %298 = vmatpush1.xpose.msra.mxu0 %v94
    %299 = vmatprep.subr.mxu0 %v87
    %300 = vmatpush1.xpose.msra.mxu0 %v86
    %301 = vmatprep.subr.mxu0 %v79
    %302 = vmatpush1.xpose.msra.mxu0 %v78
    %303 = vmatprep.subr.mxu0 %v71
    %304 = vmatpush1.xpose.msra.mxu0 %v70
    %305 = vmatprep.subr.mxu0 0.0
    %306 = vmatpush2.xpose.msra.mxu0 0.0
    %307 = vmatprep.subr.mxu0 0.0
    %308 = vmatpush2.xpose.msra.mxu0 0.0
    %309 = vmatprep.subr.mxu0 0.0
    %310 = vmatpush2.xpose.msra.mxu0 0.0
    %311 = vmatprep.subr.mxu0 0.0
    %312 = vmatpush2.xpose.msra.mxu0 0.0
    %313 = vmatprep.subr.mxu0 0.0
    %314 = vmatpush2.xpose.msra.mxu0 0.0
    %315 = vmatprep.subr.mxu0 0.0
    %316 = vmatpush2.xpose.msra.mxu0 0.0
    %317 = vmatprep.subr.mxu0 0.0
    %318 = vmatpush2.xpose.msra.mxu0 0.0
    %319 = vmatprep.subr.mxu0 0.0
    %320 = vmatpush2.xpose.msra.mxu0 0.0
    %321 = vmatprep.subr.mxu0 0.0
    %322 = vmatpush2.xpose.msra.mxu0 0.0
    %323 = vmatprep.subr.mxu0 0.0
    %324 = vmatpush2.xpose.msra.mxu0 0.0
    %325 = vmatprep.subr.mxu0 0.0
    %326 = vmatpush2.xpose.msra.mxu0 0.0
    %327 = vmatprep.subr.mxu0 0.0
    %328 = vmatpush2.xpose.msra.mxu0 0.0
    %329 = vmatprep.subr.mxu0 0.0
    %330 = vmatpush2.xpose.msra.mxu0 0.0
    %331 = vmatprep.subr.mxu0 0.0
    %332 = vmatpush2.xpose.msra.mxu0 0.0
    %333 = vmatprep.subr.mxu0 0.0
    %334 = vmatpush2.xpose.msra.mxu0 0.0
    %335 = vmatprep.subr.mxu0 0.0
    %336 = vmatpush2.xpose.msra.mxu0 0.0
    %337 = vmatprep.mubr.f32.mxu0 %v63
    %338 = vmatmul.mubr.f32.gmra.mxu0 %v62
    %v339 = vpop.f32.mrf.mxu0
    %v340 = vadd.f32 %v270, %v339
    %v341 = vpop.f32.mrf.mxu0
    %342 = vdwg.mxu0
    %343 = vmatprep.subr.mxu0 %v193
    %344 = vmatpush1.xpose.msra.mxu0 %v192
    %345 = vmatprep.subr.mxu0 %v185
    %346 = vmatpush1.xpose.msra.mxu0 %v184
    %347 = vmatprep.subr.mxu0 %v177
    %348 = vmatpush1.xpose.msra.mxu0 %v176
    %349 = vmatprep.subr.mxu0 %v169
    %350 = vmatpush1.xpose.msra.mxu0 %v168
    %351 = vmatprep.subr.mxu0 %v161
    %352 = vmatpush1.xpose.msra.mxu0 %v160
    %353 = vmatprep.subr.mxu0 %v153
    %354 = vmatpush1.xpose.msra.mxu0 %v152
    %355 = vmatprep.subr.mxu0 %v145
    %356 = vmatpush1.xpose.msra.mxu0 %v144
    %357 = vmatprep.subr.mxu0 %v137
    %358 = vmatpush1.xpose.msra.mxu0 %v136
    %359 = vmatprep.subr.mxu0 %v129
    %360 = vmatpush1.xpose.msra.mxu0 %v128
    %361 = vmatprep.subr.mxu0 %v121
    %362 = vmatpush1.xpose.msra.mxu0 %v120
    %363 = vmatprep.subr.mxu0 %v113
    %364 = vmatpush1.xpose.msra.mxu0 %v112
    %365 = vmatprep.subr.mxu0 %v105
    %366 = vmatpush1.xpose.msra.mxu0 %v104
    %367 = vmatprep.subr.mxu0 %v97
    %368 = vmatpush1.xpose.msra.mxu0 %v96
    %369 = vmatprep.subr.mxu0 %v89
    %370 = vmatpush1.xpose.msra.mxu0 %v88
    %371 = vmatprep.subr.mxu0 %v81
    %372 = vmatpush1.xpose.msra.mxu0 %v80
    %373 = vmatprep.subr.mxu0 %v73
    %374 = vmatpush1.xpose.msra.mxu0 %v72
    %375 = vmatprep.subr.mxu0 0.0
    %376 = vmatpush2.xpose.msra.mxu0 0.0
    %377 = vmatprep.subr.mxu0 0.0
    %378 = vmatpush2.xpose.msra.mxu0 0.0
    %379 = vmatprep.subr.mxu0 0.0
    %380 = vmatpush2.xpose.msra.mxu0 0.0
    %381 = vmatprep.subr.mxu0 0.0
    %382 = vmatpush2.xpose.msra.mxu0 0.0
    %383 = vmatprep.subr.mxu0 0.0
    %384 = vmatpush2.xpose.msra.mxu0 0.0
    %385 = vmatprep.subr.mxu0 0.0
    %386 = vmatpush2.xpose.msra.mxu0 0.0
    %387 = vmatprep.subr.mxu0 0.0
    %388 = vmatpush2.xpose.msra.mxu0 0.0
    %389 = vmatprep.subr.mxu0 0.0
    %390 = vmatpush2.xpose.msra.mxu0 0.0
    %391 = vmatprep.subr.mxu0 0.0
    %392 = vmatpush2.xpose.msra.mxu0 0.0
    %393 = vmatprep.subr.mxu0 0.0
    %394 = vmatpush2.xpose.msra.mxu0 0.0
    %395 = vmatprep.subr.mxu0 0.0
    %396 = vmatpush2.xpose.msra.mxu0 0.0
    %397 = vmatprep.subr.mxu0 0.0
    %398 = vmatpush2.xpose.msra.mxu0 0.0
    %399 = vmatprep.subr.mxu0 0.0
    %400 = vmatpush2.xpose.msra.mxu0 0.0
    %401 = vmatprep.subr.mxu0 0.0
    %402 = vmatpush2.xpose.msra.mxu0 0.0
    %403 = vmatprep.subr.mxu0 0.0
    %404 = vmatpush2.xpose.msra.mxu0 0.0
    %405 = vmatprep.subr.mxu0 0.0
    %406 = vmatpush2.xpose.msra.mxu0 0.0
    %407 = vmatprep.mubr.f32.mxu0 %v65
    %408 = vmatmul.mubr.f32.gmra.mxu0 %v64
    %v409 = vpop.f32.mrf.mxu0
    %v410 = vadd.f32 %v340, %v409
    %v411 = vpop.f32.mrf.mxu0
    %412 = vdwg.mxu0
    %413 = vmatprep.subr.mxu0 %v195
    %414 = vmatpush1.xpose.msra.mxu0 %v194
    %415 = vmatprep.subr.mxu0 %v187
    %416 = vmatpush1.xpose.msra.mxu0 %v186
    %417 = vmatprep.subr.mxu0 %v179
    %418 = vmatpush1.xpose.msra.mxu0 %v178
    %419 = vmatprep.subr.mxu0 %v171
    %420 = vmatpush1.xpose.msra.mxu0 %v170
    %421 = vmatprep.subr.mxu0 %v163
    %422 = vmatpush1.xpose.msra.mxu0 %v162
    %423 = vmatprep.subr.mxu0 %v155
    %424 = vmatpush1.xpose.msra.mxu0 %v154
    %425 = vmatprep.subr.mxu0 %v147
    %426 = vmatpush1.xpose.msra.mxu0 %v146
    %427 = vmatprep.subr.mxu0 %v139
    %428 = vmatpush1.xpose.msra.mxu0 %v138
    %429 = vmatprep.subr.mxu0 %v131
    %430 = vmatpush1.xpose.msra.mxu0 %v130
    %431 = vmatprep.subr.mxu0 %v123
    %432 = vmatpush1.xpose.msra.mxu0 %v122
    %433 = vmatprep.subr.mxu0 %v115
    %434 = vmatpush1.xpose.msra.mxu0 %v114
    %435 = vmatprep.subr.mxu0 %v107
    %436 = vmatpush1.xpose.msra.mxu0 %v106
    %437 = vmatprep.subr.mxu0 %v99
    %438 = vmatpush1.xpose.msra.mxu0 %v98
    %439 = vmatprep.subr.mxu0 %v91
    %440 = vmatpush1.xpose.msra.mxu0 %v90
    %441 = vmatprep.subr.mxu0 %v83
    %442 = vmatpush1.xpose.msra.mxu0 %v82
    %443 = vmatprep.subr.mxu0 %v75
    %444 = vmatpush1.xpose.msra.mxu0 %v74
    %445 = vmatprep.subr.mxu0 0.0
    %446 = vmatpush2.xpose.msra.mxu0 0.0
    %447 = vmatprep.subr.mxu0 0.0
    %448 = vmatpush2.xpose.msra.mxu0 0.0
    %449 = vmatprep.subr.mxu0 0.0
    %450 = vmatpush2.xpose.msra.mxu0 0.0
    %451 = vmatprep.subr.mxu0 0.0
    %452 = vmatpush2.xpose.msra.mxu0 0.0
    %453 = vmatprep.subr.mxu0 0.0
    %454 = vmatpush2.xpose.msra.mxu0 0.0
    %455 = vmatprep.subr.mxu0 0.0
    %456 = vmatpush2.xpose.msra.mxu0 0.0
    %457 = vmatprep.subr.mxu0 0.0
    %458 = vmatpush2.xpose.msra.mxu0 0.0
    %459 = vmatprep.subr.mxu0 0.0
    %460 = vmatpush2.xpose.msra.mxu0 0.0
    %461 = vmatprep.subr.mxu0 0.0
    %462 = vmatpush2.xpose.msra.mxu0 0.0
    %463 = vmatprep.subr.mxu0 0.0
    %464 = vmatpush2.xpose.msra.mxu0 0.0
    %465 = vmatprep.subr.mxu0 0.0
    %466 = vmatpush2.xpose.msra.mxu0 0.0
    %467 = vmatprep.subr.mxu0 0.0
    %468 = vmatpush2.xpose.msra.mxu0 0.0
    %469 = vmatprep.subr.mxu0 0.0
    %470 = vmatpush2.xpose.msra.mxu0 0.0
    %471 = vmatprep.subr.mxu0 0.0
    %472 = vmatpush2.xpose.msra.mxu0 0.0
    %473 = vmatprep.subr.mxu0 0.0
    %474 = vmatpush2.xpose.msra.mxu0 0.0
    %475 = vmatprep.subr.mxu0 0.0
    %476 = vmatpush2.xpose.msra.mxu0 0.0
    %477 = vmatprep.mubr.f32.mxu0 %v67
    %478 = vmatmul.mubr.f32.gmra.mxu0 %v66
    %v479 = vpop.f32.mrf.mxu0
    %v480 = vadd.f32 %v410, %v479
    %v481 = vpop.f32.mrf.mxu0
    %482 = vdwg.mxu0
    %v483 = vxor.u32 %v480, 2147483648
    %v484 = vmul.f32 %v483, 1.442695
    %v485 = vpow.pop %v484
    %v486 = vadd.f32 %v485, 1.0
    %v487 = vrcp.pop %v486
    %v488 = vmul.f32 1.0, %v487
    %v489 = vld [vmem:[#allocation7] sm:$0xff]
    %v490 = vld [vmem:[#allocation7 + $0x8] sm:$0xff]
    %v491 = vld [vmem:[#allocation7 + $0x10] sm:$0xff]
    %v492 = vld [vmem:[#allocation7 + $0x18] sm:$0xff]
    %v493 = vld [vmem:[#allocation7 + $0x20] sm:$0xff]
    %v494 = vld [vmem:[#allocation7 + $0x28] sm:$0xff]
    %v495 = vld [vmem:[#allocation7 + $0x30] sm:$0xff]
    %v496 = vld [vmem:[#allocation7 + $0x38] sm:$0xff]
    %v497 = vld [vmem:[#allocation7 + $0x40] sm:$0xff]
    %v498 = vld [vmem:[#allocation7 + $0x48] sm:$0xff]
    %v499 = vld [vmem:[#allocation7 + $0x50] sm:$0xff]
    %v500 = vld [vmem:[#allocation7 + $0x58] sm:$0xff]
    %v501 = vld [vmem:[#allocation7 + $0x60] sm:$0xff]
    %v502 = vld [vmem:[#allocation7 + $0x68] sm:$0xff]
    %v503 = vld [vmem:[#allocation7 + $0x70] sm:$0xff]
    %v504 = vld [vmem:[#allocation7 + $0x78] sm:$0xff]
    %v505 = vld [vmem:[%s4] sm:$0x1]
    %v507 = vlaneseq
    %v508 = vshrl.u32 %v507, 7
    %v509 = vsub.s32 0, %v508
    %v510 = vrot.slane %v505, %v509
    %512 = vmatprep.subr.mxu0 0.0
    %513 = vmatpush1.xpose.msra.mxu0 %v504
    %514 = vmatprep.subr.mxu0 0.0
    %515 = vmatpush1.xpose.msra.mxu0 %v503
    %516 = vmatprep.subr.mxu0 0.0
    %517 = vmatpush1.xpose.msra.mxu0 %v502
    %518 = vmatprep.subr.mxu0 0.0
    %519 = vmatpush1.xpose.msra.mxu0 %v501
    %520 = vmatprep.subr.mxu0 0.0
    %521 = vmatpush1.xpose.msra.mxu0 %v500
    %522 = vmatprep.subr.mxu0 0.0
    %523 = vmatpush1.xpose.msra.mxu0 %v499
    %524 = vmatprep.subr.mxu0 0.0
    %525 = vmatpush1.xpose.msra.mxu0 %v498
    %526 = vmatprep.subr.mxu0 0.0
    %527 = vmatpush1.xpose.msra.mxu0 %v497
    %528 = vmatprep.subr.mxu0 0.0
    %529 = vmatpush1.xpose.msra.mxu0 %v496
    %530 = vmatprep.subr.mxu0 0.0
    %531 = vmatpush1.xpose.msra.mxu0 %v495
    %532 = vmatprep.subr.mxu0 0.0
    %533 = vmatpush1.xpose.msra.mxu0 %v494
    %534 = vmatprep.subr.mxu0 0.0
    %535 = vmatpush1.xpose.msra.mxu0 %v493
    %536 = vmatprep.subr.mxu0 0.0
    %537 = vmatpush1.xpose.msra.mxu0 %v492
    %538 = vmatprep.subr.mxu0 0.0
    %539 = vmatpush1.xpose.msra.mxu0 %v491
    %540 = vmatprep.subr.mxu0 0.0
    %541 = vmatpush1.xpose.msra.mxu0 %v490
    %542 = vmatprep.subr.mxu0 0.0
    %543 = vmatpush1.xpose.msra.mxu0 %v489
    %544 = vmatprep.subr.mxu0 0.0
    %545 = vmatpush2.xpose.msra.mxu0 0.0
    %546 = vmatprep.subr.mxu0 0.0
    %547 = vmatpush2.xpose.msra.mxu0 0.0
    %548 = vmatprep.subr.mxu0 0.0
    %549 = vmatpush2.xpose.msra.mxu0 0.0
    %550 = vmatprep.subr.mxu0 0.0
    %551 = vmatpush2.xpose.msra.mxu0 0.0
    %552 = vmatprep.subr.mxu0 0.0
    %553 = vmatpush2.xpose.msra.mxu0 0.0
    %554 = vmatprep.subr.mxu0 0.0
    %555 = vmatpush2.xpose.msra.mxu0 0.0
    %556 = vmatprep.subr.mxu0 0.0
    %557 = vmatpush2.xpose.msra.mxu0 0.0
    %558 = vmatprep.subr.mxu0 0.0
    %559 = vmatpush2.xpose.msra.mxu0 0.0
    %560 = vmatprep.subr.mxu0 0.0
    %561 = vmatpush2.xpose.msra.mxu0 0.0
    %562 = vmatprep.subr.mxu0 0.0
    %563 = vmatpush2.xpose.msra.mxu0 0.0
    %564 = vmatprep.subr.mxu0 0.0
    %565 = vmatpush2.xpose.msra.mxu0 0.0
    %566 = vmatprep.subr.mxu0 0.0
    %567 = vmatpush2.xpose.msra.mxu0 0.0
    %568 = vmatprep.subr.mxu0 0.0
    %569 = vmatpush2.xpose.msra.mxu0 0.0
    %570 = vmatprep.subr.mxu0 0.0
    %571 = vmatpush2.xpose.msra.mxu0 0.0
    %572 = vmatprep.subr.mxu0 0.0
    %573 = vmatpush2.xpose.msra.mxu0 0.0
    %574 = vmatprep.subr.mxu0 0.0
    %575 = vmatpush2.xpose.msra.mxu0 0.0
    %576 = vmatprep.mubr.f32.mxu0 0.0
    %577 = vmatmul.mubr.f32.gmra.mxu0 %v488
    %v578 = vpop.f32.mrf.mxu0
    %v579 = vadd.f32 %v510, %v578
    %v580 = vpop.f32.mrf.mxu0
    %581 = vdwg.mxu0
    %v582 = vxor.u32 %v579, 2147483648
    %v583 = vmul.f32 %v582, 1.442695
    %v584 = vpow.pop %v583
    %v585 = vadd.f32 %v584, 1.0
    %v586 = vrcp.pop %v585
    %v587 = vmul.f32 1.0, %v586
    %588 = vst [vmem:[#allocation8] sm:$0xff] %v587
    // Predicated region
    $region34: #{tpu_custom_call.1} parent=1 // pred_check
      _
    $region35: #{tpu_custom_call.1} parent=1 // pred_check_branch
      %590 = sbr.rel (0) target = $region37
    $region36: #{tpu_custom_call.1} parent=1 // pred_region
      %s592 = ssub.s32 128, 128
      %593 = vsyncadd [#allocation4], %s592
      %s595 = sshll.u32 [#allocation8], 4
      %s596 = int_to_ptr.vmem [resolvable:$true] %s595
      %598 = dma.vmem_to_hbm [thread:$0]  %s596, 128, %s5, [#allocation4]
    $region37: #{tpu_custom_call.1} parent=1 // pred_fallthru
      _
    // Predicated region
    $region38: #{tpu_custom_call.1} parent=1 // pred_check
      _
    $region39: #{tpu_custom_call.1} parent=1 // pred_check_branch
      %600 = sbr.rel (0) target = $region41
    $region40: #{tpu_custom_call.1} parent=1 // pred_region
      %601 = dma.done [#allocation4], 128
    $region41: #{tpu_custom_call.1} parent=1 // pred_fallthru
      _
    %602 = vsyncpa [#allocation3], 1
    %603 = vsyncpa [#allocation6], 1
    %604 = vsyncpa [#allocation4], 1

</llo_original>
